<compile_context>
chip_gen: v5e
topology: v5e:2x2
jax: 0.10.0
libtpu: 0.0.40
codegen_flags: <defaults>
</compile_context>

<pallas_src>
import functools

import jax
import jax.numpy as jnp
from jax.experimental import pallas as pl
from jax.experimental.pallas import tpu as pltpu


def _round_up(x, m):
    return ((x + m - 1) // m) * m


def _resident_spec(shape):
    """BlockSpec for arrays that never change across grid steps.

    Constant index_map keeps them resident in VMEM; single-buffering
    (pl.Buffered(1)) drops the pointless second pipeline buffer.  Falls back
    to the plain resident spec if this JAX build rejects the pipeline_mode.
    """
    index_map = lambda i: (0, 0)
    try:
        return pl.BlockSpec(shape, index_map, pipeline_mode=pl.Buffered(1))
    except (AttributeError, TypeError, ValueError):
        return pl.BlockSpec(shape, index_map)


def _choose_tile(batch_aligned, block_rows):
    """Pick the batch tile: as large as requested, but >= 2 grid steps when
    there is enough work so v7x's second TensorCore gets a share."""
    tb = _round_up(max(1, min(block_rows, batch_aligned)), 8)
    if batch_aligned // tb < 2 and batch_aligned >= 16:
        tb = _round_up(batch_aligned // 2, 8)
    return tb


def _mlp_kernel(*refs, num_layers, leaky, score_scale, output_fn, output_scale):
    """Whole-MLP forward for one batch tile.

    refs = (x_ref, w0, ..., w{L-1}, b0, ..., b{L-1}, out_ref).
    Matmul chain on the MXU with f32 accumulation; activations on VPU/EUP
    in f32 (safe on v5e, which has no bf16 VALU/EUP).
    """
    x_ref = refs[0]
    w_refs = refs[1:1 + num_layers]
    b_refs = refs[1 + num_layers:1 + 2 * num_layers]
    out_ref = refs[-1]

    h = x_ref[...]
    for i in range(num_layers):
        w = w_refs[i][...]
        lhs = h if h.dtype == w.dtype else h.astype(w.dtype)
        h = jnp.dot(lhs, w, preferred_element_type=jnp.float32) + b_refs[i][...]
        if i < num_layers - 1:
            if 0.0 <= leaky <= 1.0:
                # LeakyReLU(leaky): max(h, leaky*h) == where(h>=0, h, leaky*h)
                h = jnp.maximum(h, leaky * h)
            else:
                h = jnp.where(h >= 0, h, leaky * h)

    # Output head, matching the nn.Sequential ordering in the PyTorch module:
    # score_scale is only appended when output_fn is given, then output_fn,
    # then output_scale.
    if output_fn is not None:
        if score_scale is not None:
            h = h * score_scale
        if output_fn == "sigmoid":
            h = jax.nn.sigmoid(h)
        elif output_fn == "relu":
            h = jnp.maximum(h, 0.0)
        elif output_fn == "tanh":
            h = jnp.tanh(h)
        elif output_fn == "clampexp":
            # ClampExp (normflows utils): exp(min(x, 0))
            h = jnp.exp(jnp.minimum(h, 0.0))
        else:
            raise NotImplementedError("This output function is not implemented.")
        if output_scale is not None:
            h = output_scale * h

    out_ref[...] = h.astype(out_ref.dtype)


def mlp_forward(x, weights, biases, *, leaky=0.0, score_scale=None,
                output_fn=None, output_scale=None, block_rows=4096,
                compute_dtype=None):
    """Run the MLP forward pass as a batch-tiled Pallas TPU kernel.

    x:        (batch, layers[0])            float32 (or bf16)
    weights:  list of (layers[k], layers[k+1]) arrays (PyTorch weight.T)
    biases:   list of (1, layers[k+1]) arrays
    compute_dtype: if set (e.g. jnp.bfloat16), matmul operands are cast to it;
                   accumulation / bias / activations stay f32.
    """
    num_layers = len(weights)
    assert len(biases) == num_layers
    batch, in_dim = x.shape
    out_dim = int(weights[-1].shape[1])
    out_dtype = x.dtype

    # Optional bf16 matmul operands: halves x / W HBM + VMEM traffic.
    if compute_dtype is not None and compute_dtype != x.dtype:
        x = x.astype(compute_dtype)
        weights = [w.astype(compute_dtype) for w in weights]
    weights = list(weights)
    biases = [b.astype(jnp.float32) for b in biases]

    # --- Batch tiling (rows padded to the 8-sublane granule / the tile) ---
    batch_aligned = _round_up(batch, 8)
    tb = _choose_tile(batch_aligned, block_rows)
    pb = _round_up(batch_aligned, tb)
    if pb != batch:
        x = jnp.pad(x, ((0, pb - batch), (0, 0)))
    grid = (pb // tb,)

    kernel = functools.partial(
        _mlp_kernel,
        num_layers=num_layers,
        leaky=float(leaky),
        score_scale=score_scale,
        output_fn=output_fn,
        output_scale=output_scale,
    )

    # x / out tiled over batch; weights & biases resident, single-buffered.
    in_specs = [pl.BlockSpec((tb, in_dim), lambda i: (i, 0))]
    for w in weights:
        in_specs.append(_resident_spec(w.shape))
    for b in biases:
        in_specs.append(_resident_spec(b.shape))
    out_spec = pl.BlockSpec((tb, out_dim), lambda i: (i, 0))

    # --- Explicit VMEM budget for the larger batch tile ---
    # VMEM blocks are lane-padded to 128; x/out double-buffered plus a few
    # live f32 intermediates of the widest layer.
    widest = max([in_dim] + [int(w.shape[1]) for w in weights])
    lane_cols = 128 * max(1, pl.cdiv(widest, 128))
    per_row_bytes = 4 * lane_cols * (2 + 2 + 3)
    param_bytes = (sum(int(w.size) * w.dtype.itemsize for w in weights)
                   + sum(int(b.size) * b.dtype.itemsize for b in biases))
    vmem_limit = int(min(max(tb * per_row_bytes + param_bytes + (1 << 20),
                             32 << 20), 48 << 20))

    # Advisory cost estimate (logical, unpadded sizes).
    flops = 2 * batch * sum(int(w.shape[0]) * int(w.shape[1]) for w in weights)
    transcendentals = (batch * out_dim
                       if output_fn in ("sigmoid", "tanh", "clampexp") else 0)
    bytes_accessed = (batch * in_dim * x.dtype.itemsize
                      + batch * out_dim * jnp.dtype(out_dtype).itemsize
                      + param_bytes)
    cost = pl.CostEstimate(flops=flops, transcendentals=transcendentals,
                           bytes_accessed=bytes_accessed)

    out = pl.pallas_call(
        kernel,
        out_shape=jax.ShapeDtypeStruct((pb, out_dim), out_dtype),
        grid=grid,
        in_specs=in_specs,
        out_specs=out_spec,
        compiler_params=pltpu.CompilerParams(
            dimension_semantics=("parallel",),
            vmem_limit_bytes=vmem_limit),
        cost_estimate=cost,
    )(x, *weights, *biases)

    if pb == batch:
        return out                      # fast path: no extra HBM slice pass
    return out[:batch]                  # ragged batch: drop the padded rows


def init_mlp_params(key, layers):
    """Deterministic init matching nn.Linear shapes (uniform, 1/sqrt(fan_in))."""
    weights, biases = [], []
    for k in range(len(layers) - 1):
        fan_in, fan_out = layers[k], layers[k + 1]
        key, wk, bk = jax.random.split(key, 3)
        bound = 1.0 / jnp.sqrt(fan_in)
        # stored as (in, out) = PyTorch weight.T
        w = jax.random.uniform(wk, (fan_in, fan_out), jnp.float32, -bound, bound)
        b = jax.random.uniform(bk, (1, fan_out), jnp.float32, -bound, bound)
        weights.append(w)
        biases.append(b)
    return weights, biases


def mlp_reference(x, weights, biases, *, leaky=0.0, score_scale=None,
                  output_fn=None, output_scale=None):
    """Pure-JAX reference mirroring the PyTorch nn.Sequential semantics."""
    h = x
    n = len(weights)
    for i in range(n):
        h = h @ weights[i] + biases[i]
        if i < n - 1:
            h = jnp.where(h >= 0, h, leaky * h)
    if output_fn is not None:
        if score_scale is not None:
            h = h * score_scale
        if output_fn == "sigmoid":
            h = jax.nn.sigmoid(h)
        elif output_fn == "relu":
            h = jnp.maximum(h, 0.0)
        elif output_fn == "tanh":
            h = jnp.tanh(h)
        elif output_fn == "clampexp":
            h = jnp.exp(jnp.minimum(h, 0.0))
        if output_scale is not None:
            h = output_scale * h
    return h


if __name__ == "__main__":
    # Concrete MLP config: layers=[16, 32, 32, 8], leaky=0.01, tanh output
    # scaled by 2.0 (output_scale). Dropout is an inference-mode no-op.
    # TODO(synk): dropout (training-mode Bernoulli masking) not implemented; eval mode only.
    layers = [16, 32, 32, 8]
    leaky = 0.01
    output_fn = "tanh"
    output_scale = 2.0

    key = jax.random.PRNGKey(0)
    key, xk1, xk2, xk3 = jax.random.split(key, 4)
    weights, biases = init_mlp_params(key, layers)

    # Case 1: small batch, single grid step, fast path (no wrapper slice).
    batch1 = 8
    x1 = jax.random.normal(xk1, (batch1, layers[0]), jnp.float32)
    out1 = jax.block_until_ready(
        mlp_forward(x1, weights, biases, leaky=leaky,
                    output_fn=output_fn, output_scale=output_scale))
    ref1 = mlp_reference(x1, weights, biases, leaky=leaky,
                         output_fn=output_fn, output_scale=output_scale)
    assert out1.shape == (batch1, layers[-1])
    assert jnp.allclose(out1, ref1, atol=1e-5, rtol=1e-5), "mismatch vs reference (case 1)"

    # Case 2: tiny block_rows -> several grid steps + ragged-batch slice path.
    batch2 = 20
    x2 = jax.random.normal(xk2, (batch2, layers[0]), jnp.float32)
    out2 = jax.block_until_ready(
        mlp_forward(x2, weights, biases, leaky=leaky,
                    output_fn=output_fn, output_scale=output_scale,
                    block_rows=8))
    ref2 = mlp_reference(x2, weights, biases, leaky=leaky,
                         output_fn=output_fn, output_scale=output_scale)
    assert out2.shape == (batch2, layers[-1])
    assert jnp.allclose(out2, ref2, atol=1e-5, rtol=1e-5), "mismatch vs reference (case 2)"

    # Case 3: default tile (auto-split into 2 grid steps for v7x megacore)
    # with bf16 matmul operands (f32 accumulation / activations).
    batch3 = 64
    x3 = jax.random.normal(xk3, (batch3, layers[0]), jnp.float32)
    out3 = jax.block_until_ready(
        mlp_forward(x3, weights, biases, leaky=leaky,
                    output_fn=output_fn, output_scale=output_scale,
                    compute_dtype=jnp.bfloat16))
    ref3 = mlp_reference(x3, weights, biases, leaky=leaky,
                         output_fn=output_fn, output_scale=output_scale)
    assert out3.shape == (batch3, layers[-1])
    assert jnp.allclose(out3, ref3, atol=1e-1, rtol=1e-1), "mismatch vs reference (case 3, bf16)"

    print("KERNEL_OK")
</pallas_src>

<mosaic_0001>
module attributes {stable_mosaic.version = 11 : i64} {
  func.func @_mlp_kernel(%arg0: i32, %arg1: memref<8x16xf32, #tpu.memory_space<vmem>>, %arg2: memref<16x32xf32, #tpu.memory_space<vmem>>, %arg3: memref<32x32xf32, #tpu.memory_space<vmem>>, %arg4: memref<32x8xf32, #tpu.memory_space<vmem>>, %arg5: memref<1x32xf32, #tpu.memory_space<vmem>>, %arg6: memref<1x32xf32, #tpu.memory_space<vmem>>, %arg7: memref<1x8xf32, #tpu.memory_space<vmem>>, %arg8: memref<8x8xf32, #tpu.memory_space<vmem>>) attributes {dimension_semantics = [#tpu.dimension_semantics<parallel>], iteration_bounds = array<i64: 1>, scalar_prefetch = 0 : i64, scratch_operands = 0 : i64, tpu.core_type = #tpu.core_type<tc>, window_params = [{transform_indices = @transform_0, window_bounds = array<i64: 8, 16>}, {pipeline_mode = #tpu.pipeline_mode<synchronous>, transform_indices = @transform_1, window_bounds = array<i64: 16, 32>}, {pipeline_mode = #tpu.pipeline_mode<synchronous>, transform_indices = @transform_2, window_bounds = array<i64: 32, 32>}, {pipeline_mode = #tpu.pipeline_mode<synchronous>, transform_indices = @transform_3, window_bounds = array<i64: 32, 8>}, {pipeline_mode = #tpu.pipeline_mode<synchronous>, transform_indices = @transform_4, window_bounds = array<i64: 1, 32>}, {pipeline_mode = #tpu.pipeline_mode<synchronous>, transform_indices = @transform_5, window_bounds = array<i64: 1, 32>}, {pipeline_mode = #tpu.pipeline_mode<synchronous>, transform_indices = @transform_6, window_bounds = array<i64: 1, 8>}, {transform_indices = @transform_7, window_bounds = array<i64: 8, 8>}]} {
    %c0 = arith.constant 0 : index
    %c0_0 = arith.constant 0 : index
    %0 = vector.load %arg1[%c0, %c0_0] : memref<8x16xf32, #tpu.memory_space<vmem>>, vector<8x16xf32>
    %c0_1 = arith.constant 0 : index
    %c0_2 = arith.constant 0 : index
    %1 = vector.load %arg2[%c0_1, %c0_2] : memref<16x32xf32, #tpu.memory_space<vmem>>, vector<16x32xf32>
    %cst = arith.constant dense<0.000000e+00> : vector<8x32xf32>
    %2 = tpu.matmul %0, %1, %cst {dimension_numbers = #tpu.dot_dimension_numbers<[1], [0], [0], [1], [0, 0, 1, 1], [], []>} : vector<8x16xf32>, vector<16x32xf32>, vector<8x32xf32> -> vector<8x32xf32>
    %c0_3 = arith.constant 0 : index
    %c0_4 = arith.constant 0 : index
    %3 = vector.load %arg5[%c0_3, %c0_4] : memref<1x32xf32, #tpu.memory_space<vmem>>, vector<1x32xf32>
    %4 = vector.broadcast %3 : vector<1x32xf32> to vector<8x32xf32>
    %5 = arith.addf %2, %4 : vector<8x32xf32>
    %cst_5 = arith.constant 0.00999999977 : f32
    %6 = vector.broadcast %cst_5 : f32 to vector<8x32xf32>
    %7 = arith.mulf %6, %5 : vector<8x32xf32>
    %8 = arith.maximumf %5, %7 : vector<8x32xf32>
    %c0_6 = arith.constant 0 : index
    %c0_7 = arith.constant 0 : index
    %9 = vector.load %arg3[%c0_6, %c0_7] : memref<32x32xf32, #tpu.memory_space<vmem>>, vector<32x32xf32>
    %cst_8 = arith.constant dense<0.000000e+00> : vector<8x32xf32>
    %10 = tpu.matmul %8, %9, %cst_8 {dimension_numbers = #tpu.dot_dimension_numbers<[1], [0], [0], [1], [0, 0, 1, 1], [], []>} : vector<8x32xf32>, vector<32x32xf32>, vector<8x32xf32> -> vector<8x32xf32>
    %c0_9 = arith.constant 0 : index
    %c0_10 = arith.constant 0 : index
    %11 = vector.load %arg6[%c0_9, %c0_10] : memref<1x32xf32, #tpu.memory_space<vmem>>, vector<1x32xf32>
    %12 = vector.broadcast %11 : vector<1x32xf32> to vector<8x32xf32>
    %13 = arith.addf %10, %12 : vector<8x32xf32>
    %cst_11 = arith.constant 0.00999999977 : f32
    %14 = vector.broadcast %cst_11 : f32 to vector<8x32xf32>
    %15 = arith.mulf %14, %13 : vector<8x32xf32>
    %16 = arith.maximumf %13, %15 : vector<8x32xf32>
    %c0_12 = arith.constant 0 : index
    %c0_13 = arith.constant 0 : index
    %17 = vector.load %arg4[%c0_12, %c0_13] : memref<32x8xf32, #tpu.memory_space<vmem>>, vector<32x8xf32>
    %cst_14 = arith.constant dense<0.000000e+00> : vector<8x8xf32>
    %18 = tpu.matmul %16, %17, %cst_14 {dimension_numbers = #tpu.dot_dimension_numbers<[1], [0], [0], [1], [0, 0, 1, 1], [], []>} : vector<8x32xf32>, vector<32x8xf32>, vector<8x8xf32> -> vector<8x8xf32>
    %c0_15 = arith.constant 0 : index
    %c0_16 = arith.constant 0 : index
    %19 = vector.load %arg7[%c0_15, %c0_16] : memref<1x8xf32, #tpu.memory_space<vmem>>, vector<1x8xf32>
    %20 = vector.broadcast %19 : vector<1x8xf32> to vector<8x8xf32>
    %21 = arith.addf %18, %20 : vector<8x8xf32>
    %22 = math.tanh %21 : vector<8x8xf32>
    %cst_17 = arith.constant 2.000000e+00 : f32
    %23 = vector.broadcast %cst_17 : f32 to vector<8x8xf32>
    %24 = arith.mulf %23, %22 : vector<8x8xf32>
    %c0_18 = arith.constant 0 : index
    %c0_19 = arith.constant 0 : index
    %25 = vector.load %arg8[%c0_18, %c0_19] : memref<8x8xf32, #tpu.memory_space<vmem>>, vector<8x8xf32>
    tpu.vector_store %arg8[%c0_18, %c0_19], %24 {strides = array<i32>} : memref<8x8xf32, #tpu.memory_space<vmem>>, vector<8x8xf32>,
    return
  }
  func.func @transform_0(%arg0: i32) -> (i32, i32) {
    %c0_i32 = arith.constant 0 : i32
    %c0_i32_0 = arith.constant 0 : i32
    return %arg0, %c0_i32 : i32, i32
  }
  func.func @transform_1(%arg0: i32) -> (i32, i32) {
    %c0_i32 = arith.constant 0 : i32
    %c0_i32_0 = arith.constant 0 : i32
    %c0_i32_1 = arith.constant 0 : i32
    return %c0_i32, %c0_i32_0 : i32, i32
  }
  func.func @transform_2(%arg0: i32) -> (i32, i32) {
    %c0_i32 = arith.constant 0 : i32
    %c0_i32_0 = arith.constant 0 : i32
    %c0_i32_1 = arith.constant 0 : i32
    return %c0_i32, %c0_i32_0 : i32, i32
  }
  func.func @transform_3(%arg0: i32) -> (i32, i32) {
    %c0_i32 = arith.constant 0 : i32
    %c0_i32_0 = arith.constant 0 : i32
    %c0_i32_1 = arith.constant 0 : i32
    return %c0_i32, %c0_i32_0 : i32, i32
  }
  func.func @transform_4(%arg0: i32) -> (i32, i32) {
    %c0_i32 = arith.constant 0 : i32
    %c0_i32_0 = arith.constant 0 : i32
    %c0_i32_1 = arith.constant 0 : i32
    return %c0_i32, %c0_i32_0 : i32, i32
  }
  func.func @transform_5(%arg0: i32) -> (i32, i32) {
    %c0_i32 = arith.constant 0 : i32
    %c0_i32_0 = arith.constant 0 : i32
    %c0_i32_1 = arith.constant 0 : i32
    return %c0_i32, %c0_i32_0 : i32, i32
  }
  func.func @transform_6(%arg0: i32) -> (i32, i32) {
    %c0_i32 = arith.constant 0 : i32
    %c0_i32_0 = arith.constant 0 : i32
    %c0_i32_1 = arith.constant 0 : i32
    return %c0_i32, %c0_i32_0 : i32, i32
  }
  func.func @transform_7(%arg0: i32) -> (i32, i32) {
    %c0_i32 = arith.constant 0 : i32
    %c0_i32_0 = arith.constant 0 : i32
    return %arg0, %c0_i32 : i32, i32
  }
}

</mosaic_0001>

<llo_original>
// kernel: tpu_custom_call.1
$region0: #{tpu_custom_call.1}
  #allocation0 [shape = 'u32[]', space=smem, size = 0x4, offset = 0x4, fixed_abs, tag = 'smem constant byte address 0x4 - core index']
  #allocation1 [shape = 'u32[72,128]{1,0:T(1,128)}', space=vmem, size = 0x9000, scoped, tag = 'internal scratch']
  %s0 = inlined_call_operand.vmem [shape: f32[8,16], index: 0, kind: input, shape index: {}]
  %s1 = inlined_call_operand.hbm [shape: f32[16,32], index: 1, kind: input, shape index: {}]
  %s2 = inlined_call_operand.vmem [shape: f32[32,32], index: 2, kind: input, shape index: {}]
  %s3 = inlined_call_operand.vmem [shape: f32[32,8], index: 3, kind: input, shape index: {}]
  %s4 = inlined_call_operand.vmem [shape: f32[1,32], index: 4, kind: input, shape index: {}]
  %s5 = inlined_call_operand.vmem [shape: f32[1,32], index: 5, kind: input, shape index: {}]
  %s6 = inlined_call_operand.vmem [shape: f32[1,8], index: 6, kind: input, shape index: {}]
  %s7 = inlined_call_operand.hbm [shape: f32[8,8], index: 7, kind: output, shape index: {}]
  %s8 = sld [smem:[#allocation0]]
  $region42: #{tpu_custom_call.1} parent=0
    _
  %s10 = ssub.s32 1, %s8
  %s11 = scalar_select 0, %s10, %s8
  $region1: #{tpu_custom_call.1} parent=0
    #allocation2 [shape = 'u8[8192]{0}', space=vmem, size = 0x2000, scoped, tag = 'input window, operand 1, single buffered']
    #allocation3 [shape = 's32[1]{0}', space=sflag, size = 0x4, scoped, tag = 'scoped memory for tpu_custom_call.1']
    #allocation4 [shape = 's32[1]{0}', space=sflag, size = 0x4, scoped, tag = 'scoped memory for tpu_custom_call.1']
    #allocation5 [shape = 'u8[4096]{0}', space=vmem, size = 0x1000, scoped, tag = 'output window, operand 0, single buffered']
    %12 = vsyncpa [#allocation3], 0
    %13 = vsyncpa [#allocation4], 0
    // Predicated region
    $region2: #{tpu_custom_call.1} parent=1 // pred_check
      _
    $region3: #{tpu_custom_call.1} parent=1 // pred_check_branch
      %15 = sbr.rel (0) target = $region5
    $region4: #{tpu_custom_call.1} parent=1 // pred_region
      _
    $region5: #{tpu_custom_call.1} parent=1 // pred_fallthru
      _
    // Predicated region
    $region6: #{tpu_custom_call.1} parent=1 // pred_check
      _
    $region7: #{tpu_custom_call.1} parent=1 // pred_check_branch
      %17 = sbr.rel (0) target = $region9
    $region8: #{tpu_custom_call.1} parent=1 // pred_region
      %19 = vsyncadd [#allocation3], 0
      %s20 = sshll.u32 %s1, 4
      %s21 = int_to_ptr.hbm [resolvable:$true] %s20
      %s22 = sshll.u32 [#allocation2], 4
      %s23 = int_to_ptr.vmem [resolvable:$true] %s22
      %28 = dma.hbm_to_vmem [thread:$0]  %s21, 256, %s23, [#allocation3], 128, 128, 8
    $region9: #{tpu_custom_call.1} parent=1 // pred_fallthru
      _
    // Predicated region
    $region10: #{tpu_custom_call.1} parent=1 // pred_check
      _
    $region11: #{tpu_custom_call.1} parent=1 // pred_check_branch
      %30 = sbr.rel (0) target = $region13
    $region12: #{tpu_custom_call.1} parent=1 // pred_region
      _
    $region13: #{tpu_custom_call.1} parent=1 // pred_fallthru
      _
    // Predicated region
    $region14: #{tpu_custom_call.1} parent=1 // pred_check
      _
    $region15: #{tpu_custom_call.1} parent=1 // pred_check_branch
      %32 = sbr.rel (0) target = $region17
    $region16: #{tpu_custom_call.1} parent=1 // pred_region
      _
    $region17: #{tpu_custom_call.1} parent=1 // pred_fallthru
      _
    // Predicated region
    $region18: #{tpu_custom_call.1} parent=1 // pred_check
      _
    $region19: #{tpu_custom_call.1} parent=1 // pred_check_branch
      %34 = sbr.rel (0) target = $region21
    $region20: #{tpu_custom_call.1} parent=1 // pred_region
      _
    $region21: #{tpu_custom_call.1} parent=1 // pred_fallthru
      _
    // Predicated region
    $region22: #{tpu_custom_call.1} parent=1 // pred_check
      _
    $region23: #{tpu_custom_call.1} parent=1 // pred_check_branch
      %36 = sbr.rel (0) target = $region25
    $region24: #{tpu_custom_call.1} parent=1 // pred_region
      _
    $region25: #{tpu_custom_call.1} parent=1 // pred_fallthru
      _
    // Predicated region
    $region26: #{tpu_custom_call.1} parent=1 // pred_check
      _
    $region27: #{tpu_custom_call.1} parent=1 // pred_check_branch
      %38 = sbr.rel (0) target = $region29
    $region28: #{tpu_custom_call.1} parent=1 // pred_region
      _
    $region29: #{tpu_custom_call.1} parent=1 // pred_fallthru
      _
    // Predicated region
    $region30: #{tpu_custom_call.1} parent=1 // pred_check
      _
    $region31: #{tpu_custom_call.1} parent=1 // pred_check_branch
      %40 = sbr.rel (0) target = $region33
    $region32: #{tpu_custom_call.1} parent=1 // pred_region
      %42 = dma.done [#allocation3], 256
    $region33: #{tpu_custom_call.1} parent=1 // pred_fallthru
      _
    %v43 = vld [vmem:[%s0] sm:$0xff]
    %v44 = vld [vmem:[#allocation2] sm:$0xff]
    %v45 = vld [vmem:[#allocation2 + $0x8] sm:$0xff]
    %v46 = vld [vmem:[%s4] sm:$0x1]
    %v48 = vperm.slane %v46, 0
    %vm50 = vcmask 130048
    %v52 = vsel %vm50, %v43, 0
    %54 = vmatpush.msra.mxu0 0.0
    %55 = vmatpush.msra.mxu0 0.0
    %56 = vmatpush.msra.mxu0 0.0
    %57 = vmatpush.msra.mxu0 0.0
    %58 = vmatpush.msra.mxu0 0.0
    %59 = vmatpush.msra.mxu0 0.0
    %60 = vmatpush.msra.mxu0 0.0
    %61 = vmatpush.msra.mxu0 0.0
    %62 = vmatpush.msra.mxu0 0.0
    %63 = vmatpush.msra.mxu0 0.0
    %64 = vmatpush.msra.mxu0 0.0
    %65 = vmatpush.msra.mxu0 0.0
    %66 = vmatpush.msra.mxu0 0.0
    %67 = vmatpush.msra.mxu0 0.0
    %68 = vmatpush.msra.mxu0 %v45
    %69 = vmatpush.msra.mxu0 %v44
    %70 = vmatmul.f32.gmra.mxu0 %v52
    %v71 = vpop.f32.mrf.mxu0
    %v72 = vadd.f32 %v48, %v71
    %73 = vdwg.mxu0
    %v74 = vmul.f32 %v72, 0.01
    %v75 = vmax.f32 %v72, %v74
    %v76 = vld [vmem:[%s2] sm:$0xff]
    %v77 = vld [vmem:[%s2 + $0x8] sm:$0xff]
    %v78 = vld [vmem:[%s2 + $0x10] sm:$0xff]
    %v79 = vld [vmem:[%s2 + $0x18] sm:$0xff]
    %v80 = vld [vmem:[%s5] sm:$0x1]
    %v82 = vperm.slane %v80, 0
    %vm84 = vcmask 261120
    %v86 = vsel %vm84, %v75, 0
    %88 = vmatpush.msra.mxu0 0.0
    %89 = vmatpush.msra.mxu0 0.0
    %90 = vmatpush.msra.mxu0 0.0
    %91 = vmatpush.msra.mxu0 0.0
    %92 = vmatpush.msra.mxu0 0.0
    %93 = vmatpush.msra.mxu0 0.0
    %94 = vmatpush.msra.mxu0 0.0
    %95 = vmatpush.msra.mxu0 0.0
    %96 = vmatpush.msra.mxu0 0.0
    %97 = vmatpush.msra.mxu0 0.0
    %98 = vmatpush.msra.mxu0 0.0
    %99 = vmatpush.msra.mxu0 0.0
    %100 = vmatpush.msra.mxu0 %v79
    %101 = vmatpush.msra.mxu0 %v78
    %102 = vmatpush.msra.mxu0 %v77
    %103 = vmatpush.msra.mxu0 %v76
    %104 = vmatmul.f32.gmra.mxu0 %v86
    %v105 = vpop.f32.mrf.mxu0
    %v106 = vadd.f32 %v82, %v105
    %107 = vdwg.mxu0
    %v108 = vmul.f32 %v106, 0.01
    %v109 = vmax.f32 %v106, %v108
    %v110 = vld [vmem:[%s3] sm:$0xff]
    %v111 = vld [vmem:[%s3 + $0x8] sm:$0xff]
    %v112 = vld [vmem:[%s3 + $0x10] sm:$0xff]
    %v113 = vld [vmem:[%s3 + $0x18] sm:$0xff]
    %v114 = vld [vmem:[%s6] sm:$0x1]
    %v116 = vperm.slane %v114, 0
    %v119 = vsel %vm84, %v109, 0
    %121 = vmatpush.msra.mxu0 0.0
    %122 = vmatpush.msra.mxu0 0.0
    %123 = vmatpush.msra.mxu0 0.0
    %124 = vmatpush.msra.mxu0 0.0
    %125 = vmatpush.msra.mxu0 0.0
    %126 = vmatpush.msra.mxu0 0.0
    %127 = vmatpush.msra.mxu0 0.0
    %128 = vmatpush.msra.mxu0 0.0
    %129 = vmatpush.msra.mxu0 0.0
    %130 = vmatpush.msra.mxu0 0.0
    %131 = vmatpush.msra.mxu0 0.0
    %132 = vmatpush.msra.mxu0 0.0
    %133 = vmatpush.msra.mxu0 %v113
    %134 = vmatpush.msra.mxu0 %v112
    %135 = vmatpush.msra.mxu0 %v111
    %136 = vmatpush.msra.mxu0 %v110
    %137 = vmatmul.f32.gmra.mxu0 %v119
    %v138 = vpop.f32.mrf.mxu0
    %v139 = vadd.f32 %v116, %v138
    %140 = vdwg.mxu0
    %v141 = vtanh.pop %v139
    %v142 = vmul.f32 %v141, 2.0
    %vm143 = vcmask 64512
    %144 = vst.msk [vmem:[#allocation5] sm:$0xff] %vm143, %v142
    // Predicated region
    $region34: #{tpu_custom_call.1} parent=1 // pred_check
      _
    $region35: #{tpu_custom_call.1} parent=1 // pred_check_branch
      %146 = sbr.rel (0) target = $region37
    $region36: #{tpu_custom_call.1} parent=1 // pred_region
      %148 = vsyncadd [#allocation4], 0
      %s150 = sshll.u32 [#allocation5], 4
      %s151 = int_to_ptr.vmem [resolvable:$true] %s150
      %s152 = sshll.u32 %s7, 4
      %s153 = int_to_ptr.hbm [resolvable:$true] %s152
      %155 = dma.vmem_to_hbm [thread:$0]  %s151, 128, %s153, [#allocation4]
    $region37: #{tpu_custom_call.1} parent=1 // pred_fallthru
      _
    // Predicated region
    $region38: #{tpu_custom_call.1} parent=1 // pred_check
      _
    $region39: #{tpu_custom_call.1} parent=1 // pred_check_branch
      %157 = sbr.rel (0) target = $region41
    $region40: #{tpu_custom_call.1} parent=1 // pred_region
      %159 = dma.done [#allocation4], 128
    $region41: #{tpu_custom_call.1} parent=1 // pred_fallthru
      _
    %160 = vsyncpa [#allocation3], 1
    %161 = vsyncpa [#allocation4], 1

</llo_original>
